<compile_context>
chip_gen: v6e
topology: v6e:2x2x1
jax: 0.10.0
libtpu: 0.0.40
codegen_flags: <defaults>
</compile_context>

<pallas_src>
import functools
import math

import jax
import jax.numpy as jnp
from jax.experimental import pallas as pl
from jax.experimental.pallas import tpu as pltpu


def _round_up(v, m):
    return ((v + m - 1) // m) * m


def _pow2_tile_leq(v):
    """Largest 128 * 2^k that is <= v (assumes v >= 128)."""
    t = 128
    while t * 2 <= v:
        t *= 2
    return t


def _vmem_capacity_bytes():
    try:
        return int(pltpu.get_tpu_info().vmem_capacity_bytes)
    except Exception:
        return 64 * 1024 * 1024  # conservative default (v7x per-core VMEM)


def _choose_config(n, fin_p, fa, fout_p, adj_bytes, feat_resident_override=None):
    """Pick (tm, tk, n_p, feat_resident, vmem_limit) for the current TPU gen."""
    cap = _vmem_capacity_bytes()
    budget = min(40 << 20, int(0.6 * cap))      # headroom vs v7x's 64 MiB VMEM
    n128 = _round_up(n, 128)
    tm = min(512, _pow2_tile_leq(n128))
    tk = min(2048, _pow2_tile_leq(n128))        # tm | tk  ->  lcm padding == tk

    def footprint(tm_, tk_, resident):
        feat_rows = _round_up(n128, tk_) if resident else tk_
        return (2 * tm_ * tk_ * adj_bytes                       # adj (2 bufs)
                + 2 * feat_rows * fa * 2                        # features (bf16)
                + tm_ * fa * 4                                  # f32 acc scratch
                + 2 * tm_ * fout_p * 4                          # out tile (f32)
                + 2 * (fin_p * fout_p + fout_p * fout_p) * 2    # W1 / W2 (bf16)
                + 4 * fout_p * 4)                               # biases

    if feat_resident_override is None:
        feat_resident = (2 * _round_up(n128, tk) * fa * 2 <= (8 << 20)
                         and footprint(tm, tk, True) <= budget)
    else:
        feat_resident = bool(feat_resident_override)

    while footprint(tm, tk, feat_resident) > budget and tk > tm:
        tk //= 2
    while footprint(tm, tk, feat_resident) > budget and tm > 128:
        tm //= 2

    n_p = _round_up(n, tk)
    # Keep grid[0] >= 2 when possible so dimension_semantics=("parallel", ...)
    # actually splits the row axis across both TensorCores (megacore).
    while n_p // tm < 2 and tm > 128:
        tm //= 2

    vmem_limit = int(min(0.9 * cap,
                         max(32 << 20,
                             footprint(tm, tk, feat_resident) + (8 << 20))))
    return tm, tk, n_p, feat_resident, vmem_limit


def _gin_conv_kernel(*refs, fuse_w1, feat_resident, tk):
    """Tiled aggregation acc = adj_aug @ feat with fused 2-layer-MLP epilogue.

    adj_aug already carries the (1 + eps) self-term on its diagonal, so there
    is no separate x-row / eps input and k==0 writes the accumulator directly.
    """
    if fuse_w1:
        adj_ref, feat_ref, w1_ref, b1_ref, w2_ref, b2_ref, out_ref, acc_ref = refs
    else:  # W1 was applied before aggregation (f_out < f_in)
        adj_ref, feat_ref, b1_ref, w2_ref, b2_ref, out_ref, acc_ref = refs
        w1_ref = None

    k = pl.program_id(1)

    if feat_resident:
        start = pl.multiple_of(k * tk, 128)
        feat = feat_ref[pl.ds(start, tk), :]
    else:
        feat = feat_ref[...]

    # (int8 | bf16) adj tile -> bf16 -> MXU matmul with f32 accumulation.
    part = jnp.dot(adj_ref[...].astype(jnp.bfloat16), feat,
                   preferred_element_type=jnp.float32)

    @pl.when(k == 0)
    def _():
        acc_ref[...] = part

    @pl.when(k > 0)
    def _():
        acc_ref[...] += part

    # Last k step: 2-layer MLP epilogue + lane-dense output store.
    @pl.when(k == pl.num_programs(1) - 1)
    def _():
        s = acc_ref[...]
        if w1_ref is not None:
            s = jnp.dot(s.astype(w1_ref.dtype), w1_ref[...],
                        preferred_element_type=jnp.float32)
        h = jnp.maximum(s + b1_ref[...], 0.0)
        out = jnp.dot(h.astype(w2_ref.dtype), w2_ref[...],
                      preferred_element_type=jnp.float32) + b2_ref[...]
        out_ref[...] = out.astype(out_ref.dtype)


def make_gin_conv(adj, eps, w1, b1, w2, b2, *, feat_resident=None):
    """Build a GINConv forward `f(x) -> [N, f_out]`, hoisting all one-time prep.

    adj : [N, N] dense adjacency (torch.spmm materialized densely).
    w1  : [f_in, f_out], w2 : [f_out, f_out] (pre-transposed vs torch (out,in)).
    b1, b2 : [f_out] or [1, f_out].
    The returned closure only pads x per call; the O(N^2) adjacency pad /
    (1+eps)-diagonal fold / dtype cast is done once here (cache this object).
    """
    n = adj.shape[0]
    f_in, f_out = w1.shape
    fin_p = _round_up(f_in, 128)
    fout_p = _round_up(f_out, 128)

    # When f_out < f_in, apply W1 before aggregation (linearity) to shrink the
    # aggregation width / feature stream / accumulator.
    fuse_w1 = f_out >= f_in
    fa = fin_p if fuse_w1 else fout_p

    # ---- one-time prep (dominant wrapper cost for large N; cacheable) ------
    eps_f = float(jnp.asarray(eps, jnp.float32))
    idx = jnp.arange(n)
    adj_aug = jnp.asarray(adj, jnp.float32).at[idx, idx].add(1.0 + eps_f)
    exact_i8 = bool(jnp.all((adj_aug == jnp.round(adj_aug))
                            & (jnp.abs(adj_aug) <= 127.0)))
    adj_dt, adj_bytes = (jnp.int8, 1) if exact_i8 else (jnp.bfloat16, 2)

    tm, tk, n_p, feat_resident, vmem_limit = _choose_config(
        n, fin_p, fa, fout_p, adj_bytes, feat_resident_override=feat_resident)
    grid = (n_p // tm, n_p // tk)

    adj_p = jnp.zeros((n_p, n_p), adj_dt).at[:n, :n].set(adj_aug.astype(adj_dt))
    w1_p = jnp.zeros((fin_p, fout_p), jnp.bfloat16).at[:f_in, :f_out].set(
        jnp.asarray(w1, jnp.bfloat16))
    w2_p = jnp.zeros((fout_p, fout_p), jnp.bfloat16).at[:f_out, :f_out].set(
        jnp.asarray(w2, jnp.bfloat16))
    b1_p = jnp.zeros((1, fout_p), jnp.float32).at[:, :f_out].set(
        jnp.asarray(b1, jnp.float32).reshape(1, -1))
    b2_p = jnp.zeros((1, fout_p), jnp.float32).at[:, :f_out].set(
        jnp.asarray(b2, jnp.float32).reshape(1, -1))

    # ---- BlockSpecs ---------------------------------------------------------
    in_specs = [pl.BlockSpec((tm, tk), lambda i, k: (i, k))]           # adj tile
    if feat_resident:
        in_specs.append(pl.BlockSpec((n_p, fa), lambda i, k: (0, 0)))  # resident
    else:
        in_specs.append(pl.BlockSpec((tk, fa), lambda i, k: (k, 0)))   # streamed
    if fuse_w1:
        in_specs.append(pl.BlockSpec((fin_p, fout_p), lambda i, k: (0, 0)))  # W1
    in_specs += [
        pl.BlockSpec((1, fout_p), lambda i, k: (0, 0)),                # b1
        pl.BlockSpec((fout_p, fout_p), lambda i, k: (0, 0)),           # W2
        pl.BlockSpec((1, fout_p), lambda i, k: (0, 0)),                # b2
    ]

    flops = (2 * n_p * n_p * fa
             + (2 * n_p * fin_p * fout_p if fuse_w1 else 2 * n * f_in * f_out)
             + 2 * n_p * fout_p * fout_p)
    feat_reads = 1 if feat_resident else (n_p // tm)
    bytes_accessed = int(n_p * n_p * adj_bytes
                         + feat_reads * n_p * fa * 2
                         + (fin_p * fout_p * 2 if fuse_w1 else 0)
                         + fout_p * fout_p * 2 + 2 * fout_p * 4
                         + n_p * fout_p * 4)

    kernel = functools.partial(_gin_conv_kernel, fuse_w1=fuse_w1,
                               feat_resident=feat_resident, tk=tk)

    call = pl.pallas_call(
        kernel,
        out_shape=jax.ShapeDtypeStruct((n_p, fout_p), jnp.float32),
        grid_spec=pltpu.PrefetchScalarGridSpec(
            num_scalar_prefetch=0,
            grid=grid,
            in_specs=in_specs,
            out_specs=pl.BlockSpec((tm, fout_p), lambda i, k: (i, 0)),
            scratch_shapes=[pltpu.VMEM((tm, fa), jnp.float32)],
        ),
        compiler_params=pltpu.CompilerParams(
            dimension_semantics=("parallel", "arbitrary"),
            vmem_limit_bytes=vmem_limit),
        cost_estimate=pl.CostEstimate(flops=flops, transcendentals=0,
                                      bytes_accessed=bytes_accessed),
    )

    if fuse_w1:
        def _fwd(x, adj_c, w1_c, b1_c, w2_c, b2_c):
            feat_p = jnp.zeros((n_p, fa), jnp.bfloat16).at[:n, :f_in].set(
                x.astype(jnp.bfloat16))
            return call(adj_c, feat_p, w1_c, b1_c, w2_c, b2_c)[:n, :f_out]

        fwd = jax.jit(_fwd)
        return lambda x: fwd(x, adj_p, w1_p, b1_p, w2_p, b2_p)
    else:
        w1_f32 = jnp.asarray(w1, jnp.float32)

        def _fwd(x, adj_c, w1_c, b1_c, w2_c, b2_c):
            xw = jnp.dot(x.astype(jnp.float32), w1_c)     # W1 before aggregation
            feat_p = jnp.zeros((n_p, fa), jnp.bfloat16).at[:n, :f_out].set(
                xw.astype(jnp.bfloat16))
            return call(adj_c, feat_p, b1_c, w2_c, b2_c)[:n, :f_out]

        fwd = jax.jit(_fwd)
        return lambda x: fwd(x, adj_p, w1_f32, b1_p, w2_p, b2_p)


def gin_conv(x, adj, eps, w1, b1, w2, b2, **kw):
    """One-shot convenience wrapper (prefer make_gin_conv to cache the prep)."""
    return make_gin_conv(adj, eps, w1, b1, w2, b2, **kw)(x)


def init_gin_params(key, in_features, out_features, eps=0.0):
    """Deterministic init matching GINConv.init(): U(-1/sqrt(fan_in), 1/sqrt(fan_in))."""
    k1, k2, k3, k4 = jax.random.split(key, 4)
    stdv1 = 1.0 / math.sqrt(in_features)
    stdv2 = 1.0 / math.sqrt(out_features)
    # Stored pre-transposed relative to torch's (out, in) so the kernel does x @ W.
    w1 = jax.random.uniform(k1, (in_features, out_features), jnp.float32,
                            -stdv1, stdv1)
    b1 = jax.random.uniform(k2, (1, out_features), jnp.float32, -stdv1, stdv1)
    w2 = jax.random.uniform(k3, (out_features, out_features), jnp.float32,
                            -stdv2, stdv2)
    b2 = jax.random.uniform(k4, (1, out_features), jnp.float32, -stdv2, stdv2)
    return dict(eps=jnp.float32(eps), w1=w1, b1=b1, w2=w2, b2=b2)


def gin_conv_ref_f32(x, adj, eps, w1, b1, w2, b2):
    """Pure-JAX f32 reference (matches the PyTorch module semantics)."""
    support = (1.0 + eps) * x + adj @ x
    h = jnp.maximum(support @ w1 + b1, 0.0)
    return h @ w2 + b2


def gin_conv_ref_bf16(x, adj, eps, w1, b1, w2, b2):
    """Reference mirroring the kernel's cast structure (diag-folded bf16 adj)."""
    n, f_in = x.shape
    f_out = w1.shape[1]
    idx = jnp.arange(n)
    adj_aug = jnp.asarray(adj, jnp.float32).at[idx, idx].add(
        1.0 + jnp.float32(eps))
    adj_b = adj_aug.astype(jnp.bfloat16)
    if f_out >= f_in:
        s = jnp.dot(adj_b, x.astype(jnp.bfloat16),
                    preferred_element_type=jnp.float32)
        s = jnp.dot(s.astype(jnp.bfloat16), w1.astype(jnp.bfloat16),
                    preferred_element_type=jnp.float32)
    else:
        xw = jnp.dot(x.astype(jnp.float32), w1)     # W1 before aggregation
        s = jnp.dot(adj_b, xw.astype(jnp.bfloat16),
                    preferred_element_type=jnp.float32)
    h = jnp.maximum(s + jnp.asarray(b1, jnp.float32).reshape(1, -1), 0.0)
    return (jnp.dot(h.astype(jnp.bfloat16), w2.astype(jnp.bfloat16),
                    preferred_element_type=jnp.float32)
            + jnp.asarray(b2, jnp.float32).reshape(1, -1))


if __name__ == "__main__":
    base_key = jax.random.PRNGKey(0)

    def run_case(tag, n, f_in, f_out, eps, feat_resident=None):
        kx, ka, kp = jax.random.split(jax.random.fold_in(base_key, hash(tag) % 997), 3)
        x = jax.random.normal(kx, (n, f_in), jnp.float32)
        a = (jax.random.uniform(ka, (n, n)) > 0.6).astype(jnp.float32)
        adj = jnp.maximum(a, a.T)          # dense symmetric 0/1 adjacency
        params = init_gin_params(kp, f_in, f_out, eps=eps)

        fwd = make_gin_conv(adj, params["eps"], params["w1"], params["b1"],
                            params["w2"], params["b2"],
                            feat_resident=feat_resident)
        out = jax.block_until_ready(fwd(x))

        ref_b = gin_conv_ref_bf16(x, adj, params["eps"], params["w1"],
                                  params["b1"], params["w2"], params["b2"])
        ref_f = gin_conv_ref_f32(x, adj, params["eps"], params["w1"],
                                 params["b1"], params["w2"], params["b2"])
        assert out.shape == (n, f_out)
        # Tight check vs a reference with matching bf16 cast structure.
        assert jnp.allclose(out, ref_b, atol=1e-2, rtol=1e-2), (
            tag, float(jnp.max(jnp.abs(out - ref_b))))
        # Sanity check vs the pure-f32 module semantics (bf16 rounding slack).
        assert float(jnp.max(jnp.abs(out - ref_f))) < 0.3, tag

    # f_out > f_in: W1 fused in the epilogue, int8 adjacency, resident features.
    run_case("fused_w1_int8", n=8, f_in=16, f_out=32, eps=0.0)
    # f_out < f_in: W1 applied before aggregation, bf16 adjacency (eps != 0).
    run_case("pre_w1_bf16", n=10, f_in=64, f_out=16, eps=0.1)
    # Streamed (tk, F) feature-panel path (resident path disabled).
    run_case("streamed_feat", n=8, f_in=16, f_out=32, eps=0.0,
             feat_resident=False)

    print("KERNEL_OK")
</pallas_src>

<mosaic_0001>
module attributes {stable_mosaic.version = 11 : i64} {
  func.func @_gin_conv_kernel(%arg0: i32, %arg1: i32, %arg2: memref<128x128xi8, #tpu.memory_space<vmem>>, %arg3: memref<128x128xbf16, #tpu.memory_space<vmem>>, %arg4: memref<128x128xbf16, #tpu.memory_space<vmem>>, %arg5: memref<1x128xf32, #tpu.memory_space<vmem>>, %arg6: memref<128x128xbf16, #tpu.memory_space<vmem>>, %arg7: memref<1x128xf32, #tpu.memory_space<vmem>>, %arg8: memref<128x128xf32, #tpu.memory_space<vmem>>, %arg9: memref<128x128xf32, #tpu.memory_space<vmem>>) attributes {dimension_semantics = [#tpu.dimension_semantics<parallel>, #tpu.dimension_semantics<arbitrary>], iteration_bounds = array<i64: 1, 1>, scalar_prefetch = 0 : i64, scratch_operands = 1 : i64, tpu.core_type = #tpu.core_type<tc>, window_params = [{transform_indices = @transform_0, window_bounds = array<i64: 128, 128>}, {pipeline_mode = #tpu.pipeline_mode<synchronous>, transform_indices = @transform_1, window_bounds = array<i64: 128, 128>}, {pipeline_mode = #tpu.pipeline_mode<synchronous>, transform_indices = @transform_2, window_bounds = array<i64: 128, 128>}, {pipeline_mode = #tpu.pipeline_mode<synchronous>, transform_indices = @transform_3, window_bounds = array<i64: 1, 128>}, {pipeline_mode = #tpu.pipeline_mode<synchronous>, transform_indices = @transform_4, window_bounds = array<i64: 128, 128>}, {pipeline_mode = #tpu.pipeline_mode<synchronous>, transform_indices = @transform_5, window_bounds = array<i64: 1, 128>}, {transform_indices = @transform_6, window_bounds = array<i64: 128, 128>}]} {
    %c128_i32 = arith.constant 128 : i32
    %0 = arith.muli %arg1, %c128_i32 : i32
    %1 = tpu.assume_multiple %0, 128 : i32
    %2 = arith.index_cast %1 : i32 to index
    %c0 = arith.constant 0 : index
    %3 = vector.load %arg3[%2, %c0] : memref<128x128xbf16, #tpu.memory_space<vmem>>, vector<128x128xbf16>
    %c0_0 = arith.constant 0 : index
    %c0_1 = arith.constant 0 : index
    %4 = vector.load %arg2[%c0_0, %c0_1] : memref<128x128xi8, #tpu.memory_space<vmem>>, vector<128x128xi8>
    %5 = arith.sitofp %4 : vector<128x128xi8> to vector<128x128xbf16>
    %cst = arith.constant dense<0.000000e+00> : vector<128x128xf32>
    %6 = tpu.matmul %5, %3, %cst {dimension_numbers = #tpu.dot_dimension_numbers<[1], [0], [0], [1], [0, 0, 1, 1], [], []>} : vector<128x128xbf16>, vector<128x128xbf16>, vector<128x128xf32> -> vector<128x128xf32>
    %c0_i32 = arith.constant 0 : i32
    %7 = arith.cmpi eq, %arg1, %c0_i32 : i32
    %8 = arith.extui %7 : i1 to i32
    %c0_i32_2 = arith.constant 0 : i32
    %9 = arith.cmpi ne, %8, %c0_i32_2 : i32
    scf.if %9 {
      %c0_7 = arith.constant 0 : index
      %c0_8 = arith.constant 0 : index
      %16 = vector.load %arg9[%c0_7, %c0_8] : memref<128x128xf32, #tpu.memory_space<vmem>>, vector<128x128xf32>
      tpu.vector_store %arg9[%c0_7, %c0_8], %6 {strides = array<i32>} : memref<128x128xf32, #tpu.memory_space<vmem>>, vector<128x128xf32>,
    } else {
    }
    %c0_i32_3 = arith.constant 0 : i32
    %10 = arith.cmpi sgt, %arg1, %c0_i32_3 : i32
    %11 = arith.extui %10 : i1 to i32
    %c0_i32_4 = arith.constant 0 : i32
    %12 = arith.cmpi ne, %11, %c0_i32_4 : i32
    scf.if %12 {
      %c0_7 = arith.constant 0 : index
      %c0_8 = arith.constant 0 : index
      %16 = vector.load %arg9[%c0_7, %c0_8] : memref<128x128xf32, #tpu.memory_space<vmem>>, vector<128x128xf32>
      %17 = arith.addf %16, %6 : vector<128x128xf32>
      %c0_9 = arith.constant 0 : index
      %c0_10 = arith.constant 0 : index
      %18 = vector.load %arg9[%c0_9, %c0_10] : memref<128x128xf32, #tpu.memory_space<vmem>>, vector<128x128xf32>
      tpu.vector_store %arg9[%c0_9, %c0_10], %17 {strides = array<i32>} : memref<128x128xf32, #tpu.memory_space<vmem>>, vector<128x128xf32>,
    } else {
    }
    %c0_i32_5 = arith.constant 0 : i32
    %13 = arith.cmpi eq, %arg1, %c0_i32_5 : i32
    %14 = arith.extui %13 : i1 to i32
    %c0_i32_6 = arith.constant 0 : i32
    %15 = arith.cmpi ne, %14, %c0_i32_6 : i32
    scf.if %15 {
      %c0_7 = arith.constant 0 : index
      %c0_8 = arith.constant 0 : index
      %16 = vector.load %arg9[%c0_7, %c0_8] : memref<128x128xf32, #tpu.memory_space<vmem>>, vector<128x128xf32>
      %17 = arith.truncf %16 : vector<128x128xf32> to vector<128x128xbf16>
      %c0_9 = arith.constant 0 : index
      %c0_10 = arith.constant 0 : index
      %18 = vector.load %arg4[%c0_9, %c0_10] : memref<128x128xbf16, #tpu.memory_space<vmem>>, vector<128x128xbf16>
      %cst_11 = arith.constant dense<0.000000e+00> : vector<128x128xf32>
      %19 = tpu.matmul %17, %18, %cst_11 {dimension_numbers = #tpu.dot_dimension_numbers<[1], [0], [0], [1], [0, 0, 1, 1], [], []>} : vector<128x128xbf16>, vector<128x128xbf16>, vector<128x128xf32> -> vector<128x128xf32>
      %c0_12 = arith.constant 0 : index
      %c0_13 = arith.constant 0 : index
      %20 = vector.load %arg5[%c0_12, %c0_13] : memref<1x128xf32, #tpu.memory_space<vmem>>, vector<1x128xf32>
      %21 = vector.broadcast %20 : vector<1x128xf32> to vector<128x128xf32>
      %22 = arith.addf %19, %21 : vector<128x128xf32>
      %cst_14 = arith.constant 0.000000e+00 : f32
      %23 = vector.broadcast %cst_14 : f32 to vector<128x128xf32>
      %24 = arith.maximumf %22, %23 : vector<128x128xf32>
      %25 = arith.truncf %24 : vector<128x128xf32> to vector<128x128xbf16>
      %c0_15 = arith.constant 0 : index
      %c0_16 = arith.constant 0 : index
      %26 = vector.load %arg6[%c0_15, %c0_16] : memref<128x128xbf16, #tpu.memory_space<vmem>>, vector<128x128xbf16>
      %cst_17 = arith.constant dense<0.000000e+00> : vector<128x128xf32>
      %27 = tpu.matmul %25, %26, %cst_17 {dimension_numbers = #tpu.dot_dimension_numbers<[1], [0], [0], [1], [0, 0, 1, 1], [], []>} : vector<128x128xbf16>, vector<128x128xbf16>, vector<128x128xf32> -> vector<128x128xf32>
      %c0_18 = arith.constant 0 : index
      %c0_19 = arith.constant 0 : index
      %28 = vector.load %arg7[%c0_18, %c0_19] : memref<1x128xf32, #tpu.memory_space<vmem>>, vector<1x128xf32>
      %29 = vector.broadcast %28 : vector<1x128xf32> to vector<128x128xf32>
      %30 = arith.addf %27, %29 : vector<128x128xf32>
      %c0_20 = arith.constant 0 : index
      %c0_21 = arith.constant 0 : index
      %31 = vector.load %arg8[%c0_20, %c0_21] : memref<128x128xf32, #tpu.memory_space<vmem>>, vector<128x128xf32>
      tpu.vector_store %arg8[%c0_20, %c0_21], %30 {strides = array<i32>} : memref<128x128xf32, #tpu.memory_space<vmem>>, vector<128x128xf32>,
    } else {
    }
    return
  }
  func.func @transform_0(%arg0: i32, %arg1: i32) -> (i32, i32) {
    %c0_i32 = arith.constant 0 : i32
    return %arg0, %arg1 : i32, i32
  }
  func.func @transform_1(%arg0: i32, %arg1: i32) -> (i32, i32) {
    %c0_i32 = arith.constant 0 : i32
    %c0_i32_0 = arith.constant 0 : i32
    %c0_i32_1 = arith.constant 0 : i32
    return %c0_i32, %c0_i32_0 : i32, i32
  }
  func.func @transform_2(%arg0: i32, %arg1: i32) -> (i32, i32) {
    %c0_i32 = arith.constant 0 : i32
    %c0_i32_0 = arith.constant 0 : i32
    %c0_i32_1 = arith.constant 0 : i32
    return %c0_i32, %c0_i32_0 : i32, i32
  }
  func.func @transform_3(%arg0: i32, %arg1: i32) -> (i32, i32) {
    %c0_i32 = arith.constant 0 : i32
    %c0_i32_0 = arith.constant 0 : i32
    %c0_i32_1 = arith.constant 0 : i32
    return %c0_i32, %c0_i32_0 : i32, i32
  }
  func.func @transform_4(%arg0: i32, %arg1: i32) -> (i32, i32) {
    %c0_i32 = arith.constant 0 : i32
    %c0_i32_0 = arith.constant 0 : i32
    %c0_i32_1 = arith.constant 0 : i32
    return %c0_i32, %c0_i32_0 : i32, i32
  }
  func.func @transform_5(%arg0: i32, %arg1: i32) -> (i32, i32) {
    %c0_i32 = arith.constant 0 : i32
    %c0_i32_0 = arith.constant 0 : i32
    %c0_i32_1 = arith.constant 0 : i32
    return %c0_i32, %c0_i32_0 : i32, i32
  }
  func.func @transform_6(%arg0: i32, %arg1: i32) -> (i32, i32) {
    %c0_i32 = arith.constant 0 : i32
    %c0_i32_0 = arith.constant 0 : i32
    return %arg0, %c0_i32 : i32, i32
  }
}

</mosaic_0001>

<llo_original>
// kernel: _fwd.1
$region0: #{_fwd.1}
  #allocation0 [shape = 'u32[]', space=smem, size = 0x4, offset = 0x4, fixed_abs, tag = 'smem constant byte address 0x4 - core index']
  #allocation1 [shape = 'u32[144,128]{1,0:T(1,128)}', space=vmem, size = 0x12000, scoped, tag = 'internal scratch']
  #allocation2 [shape = 'f32[128,128]{1,0:T(8,128)}', space=vmem, size = 0x10000, scoped, tag = 'scratch operand']
  %s0 = inlined_call_operand.hbm [shape: s8[128,128], index: 0, kind: input, shape index: {}]
  %s1 = inlined_call_operand.vmem [shape: bf16[128,128], index: 1, kind: input, shape index: {}]
  %s2 = inlined_call_operand.vmem [shape: bf16[128,128], index: 2, kind: input, shape index: {}]
  %s3 = inlined_call_operand.vmem [shape: f32[1,128], index: 3, kind: input, shape index: {}]
  %s4 = inlined_call_operand.hbm [shape: bf16[128,128], index: 4, kind: input, shape index: {}]
  %s5 = inlined_call_operand.vmem [shape: f32[1,128], index: 5, kind: input, shape index: {}]
  %s6 = inlined_call_operand.vmem [shape: f32[128,128], index: 6, kind: output, shape index: {}]
  %s7 = sld [smem:[#allocation0]]
  $region54: #{_fwd.1} parent=0
    _
  %s9 = ssub.s32 1, %s7
  %s10 = scalar_select 0, %s9, %s7
  $region1: #{_fwd.1} parent=0
    #allocation3 [shape = 'u8[16384]{0}', space=vmem, size = 0x4000, scoped, tag = 'input window, operand 0, single buffered']
    #allocation4 [shape = 's32[1]{0}', space=sflag, size = 0x4, scoped, tag = 'scoped memory for _fwd.1']
    #allocation5 [shape = 'u8[32768]{0}', space=vmem, size = 0x8000, scoped, tag = 'input window, operand 4, single buffered']
    #allocation6 [shape = 's32[1]{0}', space=sflag, size = 0x4, scoped, tag = 'scoped memory for _fwd.1']
    %11 = vsyncpa [#allocation4], 0
    %12 = vsyncpa [#allocation6], 0
    // Predicated region
    $region2: #{_fwd.1} parent=1 // pred_check
      _
    $region3: #{_fwd.1} parent=1 // pred_check_branch
      %14 = sbr.rel (0) target = $region5
    $region4: #{_fwd.1} parent=1 // pred_region
      %s16 = ssub.s32 512, 512
      %17 = vsyncadd [#allocation4], %s16
      %s18 = sshll.u32 [#allocation3], 4
      %s19 = int_to_ptr.vmem [resolvable:$true] %s18
      %24 = dma.hbm_to_vmem [thread:$0]  %s0, 512, %s19, [#allocation4], 128, 128, 8
    $region5: #{_fwd.1} parent=1 // pred_fallthru
      _
    // Predicated region
    $region6: #{_fwd.1} parent=1 // pred_check
      _
    $region7: #{_fwd.1} parent=1 // pred_check_branch
      %26 = sbr.rel (0) target = $region9
    $region8: #{_fwd.1} parent=1 // pred_region
      _
    $region9: #{_fwd.1} parent=1 // pred_fallthru
      _
    // Predicated region
    $region10: #{_fwd.1} parent=1 // pred_check
      _
    $region11: #{_fwd.1} parent=1 // pred_check_branch
      %28 = sbr.rel (0) target = $region13
    $region12: #{_fwd.1} parent=1 // pred_region
      _
    $region13: #{_fwd.1} parent=1 // pred_fallthru
      _
    // Predicated region
    $region14: #{_fwd.1} parent=1 // pred_check
      _
    $region15: #{_fwd.1} parent=1 // pred_check_branch
      %30 = sbr.rel (0) target = $region17
    $region16: #{_fwd.1} parent=1 // pred_region
      _
    $region17: #{_fwd.1} parent=1 // pred_fallthru
      _
    // Predicated region
    $region18: #{_fwd.1} parent=1 // pred_check
      _
    $region19: #{_fwd.1} parent=1 // pred_check_branch
      %32 = sbr.rel (0) target = $region21
    $region20: #{_fwd.1} parent=1 // pred_region
      %s34 = ssub.s32 1024, 1024
      %35 = vsyncadd [#allocation6], %s34
      %s36 = sshll.u32 [#allocation5], 4
      %s37 = int_to_ptr.vmem [resolvable:$true] %s36
      %42 = dma.hbm_to_vmem [thread:$0]  %s4, 1024, %s37, [#allocation6], 64, 64, 4
    $region21: #{_fwd.1} parent=1 // pred_fallthru
      _
    // Predicated region
    $region22: #{_fwd.1} parent=1 // pred_check
      _
    $region23: #{_fwd.1} parent=1 // pred_check_branch
      %44 = sbr.rel (0) target = $region25
    $region24: #{_fwd.1} parent=1 // pred_region
      _
    $region25: #{_fwd.1} parent=1 // pred_fallthru
      _
    // Predicated region
    $region26: #{_fwd.1} parent=1 // pred_check
      _
    $region27: #{_fwd.1} parent=1 // pred_check_branch
      %46 = sbr.rel (0) target = $region29
    $region28: #{_fwd.1} parent=1 // pred_region
      %47 = dma.done [#allocation4], 512
    $region29: #{_fwd.1} parent=1 // pred_fallthru
      _
    // Predicated region
    $region30: #{_fwd.1} parent=1 // pred_check
      _
    $region31: #{_fwd.1} parent=1 // pred_check_branch
      %49 = sbr.rel (0) target = $region33
    $region32: #{_fwd.1} parent=1 // pred_region
      %50 = dma.done [#allocation6], 1024
    $region33: #{_fwd.1} parent=1 // pred_fallthru
      _
    %s52 = smul.u32 0, 128
    %s53 = sshra.s32 %s52, 3
    %s54 = sand.u32 %s52, 7
    %s55 = smul.addr %s53, 4
    %s56 = scalar_lea.vmem %s1, %s55
    %v57 = vld [vmem:[%s56] sm:$0xf]
    %v58 = vld [vmem:[%s56 + $0x4] sm:$0xf]
    %v59 = vld [vmem:[%s56 + $0x8] sm:$0xf]
    %v60 = vld [vmem:[%s56 + $0xc] sm:$0xf]
    %v61 = vld [vmem:[%s56 + $0x10] sm:$0xf]
    %v62 = vld [vmem:[%s56 + $0x14] sm:$0xf]
    %v63 = vld [vmem:[%s56 + $0x18] sm:$0xf]
    %v64 = vld [vmem:[%s56 + $0x1c] sm:$0xf]
    %v65 = vld [vmem:[%s56 + $0x20] sm:$0xf]
    %v66 = vld [vmem:[%s56 + $0x24] sm:$0xf]
    %v67 = vld [vmem:[%s56 + $0x28] sm:$0xf]
    %v68 = vld [vmem:[%s56 + $0x2c] sm:$0xf]
    %v69 = vld [vmem:[%s56 + $0x30] sm:$0xf]
    %v70 = vld [vmem:[%s56 + $0x34] sm:$0xf]
    %v71 = vld [vmem:[%s56 + $0x38] sm:$0xf]
    %v72 = vld [vmem:[%s56 + $0x3c] sm:$0xf]
    %v73 = vld [vmem:[#allocation3] sm:$0xff]
    %v74 = vld [vmem:[#allocation3 + $0x8] sm:$0xff]
    %v75 = vld [vmem:[#allocation3 + $0x10] sm:$0xff]
    %v76 = vld [vmem:[#allocation3 + $0x18] sm:$0xff]
    %v77 = vunpack.c.l.s8.bf16 %v73
    %v78 = vunpack.c.h.s8.bf16 %v73
    %v79 = vunpack.c.l.s8.bf16 %v74
    %v80 = vunpack.c.h.s8.bf16 %v74
    %v81 = vunpack.c.l.s8.bf16 %v75
    %v82 = vunpack.c.h.s8.bf16 %v75
    %v83 = vunpack.c.l.s8.bf16 %v76
    %v84 = vunpack.c.h.s8.bf16 %v76
    %v101 = vunpack.c.l.b16 %v57
    %v102 = vunpack.c.l.b16 %v58
    %v103 = vunpack.c.l.b16 %v59
    %v104 = vunpack.c.l.b16 %v60
    %v105 = vunpack.c.l.b16 %v61
    %v106 = vunpack.c.l.b16 %v62
    %v107 = vunpack.c.l.b16 %v63
    %v108 = vunpack.c.l.b16 %v64
    %v109 = vunpack.c.l.b16 %v65
    %v110 = vunpack.c.l.b16 %v66
    %v111 = vunpack.c.l.b16 %v67
    %v112 = vunpack.c.l.b16 %v68
    %v113 = vunpack.c.l.b16 %v69
    %v114 = vunpack.c.l.b16 %v70
    %v115 = vunpack.c.l.b16 %v71
    %v116 = vunpack.c.l.b16 %v72
    %v117 = vpack.c.b16 %v102, %v101
    %v118 = vpack.c.b16 %v104, %v103
    %v119 = vpack.c.b16 %v106, %v105
    %v120 = vpack.c.b16 %v108, %v107
    %v121 = vpack.c.b16 %v110, %v109
    %v122 = vpack.c.b16 %v112, %v111
    %v123 = vpack.c.b16 %v114, %v113
    %v124 = vpack.c.b16 %v116, %v115
    %133 = vmatprep.subr.bf16.mxu0 0
    %134 = vmatpush1.bf16.msra.mxu0 %v124
    %135 = vmatprep.subr.bf16.mxu0 0
    %136 = vmatpush1.bf16.msra.mxu0 %v123
    %137 = vmatprep.subr.bf16.mxu0 0
    %138 = vmatpush1.bf16.msra.mxu0 %v122
    %139 = vmatprep.subr.bf16.mxu0 0
    %140 = vmatpush1.bf16.msra.mxu0 %v121
    %141 = vmatprep.subr.bf16.mxu0 0
    %142 = vmatpush1.bf16.msra.mxu0 %v120
    %143 = vmatprep.subr.bf16.mxu0 0
    %144 = vmatpush1.bf16.msra.mxu0 %v119
    %145 = vmatprep.subr.bf16.mxu0 0
    %146 = vmatpush1.bf16.msra.mxu0 %v118
    %147 = vmatprep.subr.bf16.mxu0 0
    %148 = vmatpush1.bf16.msra.mxu0 %v117
    %149 = vmatprep.subr.bf16.mxu0 0
    %150 = vmatpush2.bf16.msra.mxu0 0
    %151 = vmatprep.subr.bf16.mxu0 0
    %152 = vmatpush2.bf16.msra.mxu0 0
    %153 = vmatprep.subr.bf16.mxu0 0
    %154 = vmatpush2.bf16.msra.mxu0 0
    %155 = vmatprep.subr.bf16.mxu0 0
    %156 = vmatpush2.bf16.msra.mxu0 0
    %157 = vmatprep.subr.bf16.mxu0 0
    %158 = vmatpush2.bf16.msra.mxu0 0
    %159 = vmatprep.subr.bf16.mxu0 0
    %160 = vmatpush2.bf16.msra.mxu0 0
    %161 = vmatprep.subr.bf16.mxu0 0
    %162 = vmatpush2.bf16.msra.mxu0 0
    %163 = vmatprep.subr.bf16.mxu0 0
    %164 = vmatpush2.bf16.msra.mxu0 0
    %165 = vmatprep.mubr.bf16.mxu0 0
    %166 = vmatmul.mubr.bf16.gmra.mxu0 %v77
    %v167 = vpop.f32.mrf.mxu0
    %v168 = vadd.f32 0.0, %v167
    %v169 = vpop.f32.mrf.mxu0
    %v170 = vpop.f32.mrf.mxu0
    %v171 = vadd.f32 0.0, %v170
    %v172 = vpop.f32.mrf.mxu0
    %173 = vmatprep.mubr.bf16.mxu0 0
    %174 = vmatmul.mubr.bf16.gmra.mxu0 %v78
    %v175 = vpop.f32.mrf.mxu0
    %v176 = vadd.f32 0.0, %v175
    %v177 = vpop.f32.mrf.mxu0
    %v178 = vpop.f32.mrf.mxu0
    %v179 = vadd.f32 0.0, %v178
    %v180 = vpop.f32.mrf.mxu0
    %181 = vmatprep.mubr.bf16.mxu0 0
    %182 = vmatmul.mubr.bf16.gmra.mxu0 %v79
    %v183 = vpop.f32.mrf.mxu0
    %v184 = vadd.f32 0.0, %v183
    %v185 = vpop.f32.mrf.mxu0
    %v186 = vpop.f32.mrf.mxu0
    %v187 = vadd.f32 0.0, %v186
    %v188 = vpop.f32.mrf.mxu0
    %189 = vmatprep.mubr.bf16.mxu0 0
    %190 = vmatmul.mubr.bf16.gmra.mxu0 %v80
    %v191 = vpop.f32.mrf.mxu0
    %v192 = vadd.f32 0.0, %v191
    %v193 = vpop.f32.mrf.mxu0
    %v194 = vpop.f32.mrf.mxu0
    %v195 = vadd.f32 0.0, %v194
    %v196 = vpop.f32.mrf.mxu0
    %197 = vmatprep.mubr.bf16.mxu0 0
    %198 = vmatmul.mubr.bf16.gmra.mxu0 %v81
    %v199 = vpop.f32.mrf.mxu0
    %v200 = vadd.f32 0.0, %v199
    %v201 = vpop.f32.mrf.mxu0
    %v202 = vpop.f32.mrf.mxu0
    %v203 = vadd.f32 0.0, %v202
    %v204 = vpop.f32.mrf.mxu0
    %205 = vmatprep.mubr.bf16.mxu0 0
    %206 = vmatmul.mubr.bf16.gmra.mxu0 %v82
    %v207 = vpop.f32.mrf.mxu0
    %v208 = vadd.f32 0.0, %v207
    %v209 = vpop.f32.mrf.mxu0
    %v210 = vpop.f32.mrf.mxu0
    %v211 = vadd.f32 0.0, %v210
    %v212 = vpop.f32.mrf.mxu0
    %213 = vmatprep.mubr.bf16.mxu0 0
    %214 = vmatmul.mubr.bf16.gmra.mxu0 %v83
    %v215 = vpop.f32.mrf.mxu0
    %v216 = vadd.f32 0.0, %v215
    %v217 = vpop.f32.mrf.mxu0
    %v218 = vpop.f32.mrf.mxu0
    %v219 = vadd.f32 0.0, %v218
    %v220 = vpop.f32.mrf.mxu0
    %221 = vmatprep.mubr.bf16.mxu0 0
    %222 = vmatmul.mubr.bf16.gmra.mxu0 %v84
    %v223 = vpop.f32.mrf.mxu0
    %v224 = vadd.f32 0.0, %v223
    %v225 = vpop.f32.mrf.mxu0
    %v226 = vpop.f32.mrf.mxu0
    %v227 = vadd.f32 0.0, %v226
    %v228 = vpop.f32.mrf.mxu0
    %229 = vdwg.mxu0
    %p230 = scmp.eq.s32.totalorder 0, 0
    // Predicated region
    $region34: #{_fwd.1} parent=1 // pred_check
      %p231 = pneg %p230
    $region35: #{_fwd.1} parent=1 // pred_check_branch
      %233 = sbr.rel (%p231) target = $region37
    $region36: #{_fwd.1} parent=1 // pred_region
      %234 = vst [vmem:[#allocation2] sm:$0xff] %v168
      %235 = vst [vmem:[#allocation2 + $0x8] sm:$0xff] %v171
      %236 = vst [vmem:[#allocation2 + $0x10] sm:$0xff] %v176
      %237 = vst [vmem:[#allocation2 + $0x18] sm:$0xff] %v179
      %238 = vst [vmem:[#allocation2 + $0x20] sm:$0xff] %v184
      %239 = vst [vmem:[#allocation2 + $0x28] sm:$0xff] %v187
      %240 = vst [vmem:[#allocation2 + $0x30] sm:$0xff] %v192
      %241 = vst [vmem:[#allocation2 + $0x38] sm:$0xff] %v195
      %242 = vst [vmem:[#allocation2 + $0x40] sm:$0xff] %v200
      %243 = vst [vmem:[#allocation2 + $0x48] sm:$0xff] %v203
      %244 = vst [vmem:[#allocation2 + $0x50] sm:$0xff] %v208
      %245 = vst [vmem:[#allocation2 + $0x58] sm:$0xff] %v211
      %246 = vst [vmem:[#allocation2 + $0x60] sm:$0xff] %v216
      %247 = vst [vmem:[#allocation2 + $0x68] sm:$0xff] %v219
      %248 = vst [vmem:[#allocation2 + $0x70] sm:$0xff] %v224
      %249 = vst [vmem:[#allocation2 + $0x78] sm:$0xff] %v227
    $region37: #{_fwd.1} parent=1 // pred_fallthru
      _
    %p250 = scmp.gt.s32.totalorder 0, 0
    // Predicated region
    $region38: #{_fwd.1} parent=1 // pred_check
      %p251 = pneg %p250
    $region39: #{_fwd.1} parent=1 // pred_check_branch
      %253 = sbr.rel (%p251) target = $region41
    $region40: #{_fwd.1} parent=1 // pred_region
      %v254 = vld [vmem:[#allocation2] sm:$0xff]
      %v255 = vld [vmem:[#allocation2 + $0x8] sm:$0xff]
      %v256 = vld [vmem:[#allocation2 + $0x10] sm:$0xff]
      %v257 = vld [vmem:[#allocation2 + $0x18] sm:$0xff]
      %v258 = vld [vmem:[#allocation2 + $0x20] sm:$0xff]
      %v259 = vld [vmem:[#allocation2 + $0x28] sm:$0xff]
      %v260 = vld [vmem:[#allocation2 + $0x30] sm:$0xff]
      %v261 = vld [vmem:[#allocation2 + $0x38] sm:$0xff]
      %v262 = vld [vmem:[#allocation2 + $0x40] sm:$0xff]
      %v263 = vld [vmem:[#allocation2 + $0x48] sm:$0xff]
      %v264 = vld [vmem:[#allocation2 + $0x50] sm:$0xff]
      %v265 = vld [vmem:[#allocation2 + $0x58] sm:$0xff]
      %v266 = vld [vmem:[#allocation2 + $0x60] sm:$0xff]
      %v267 = vld [vmem:[#allocation2 + $0x68] sm:$0xff]
      %v268 = vld [vmem:[#allocation2 + $0x70] sm:$0xff]
      %v269 = vld [vmem:[#allocation2 + $0x78] sm:$0xff]
      %v270 = vadd.f32 %v254, %v168
      %v271 = vadd.f32 %v255, %v171
      %v272 = vadd.f32 %v256, %v176
      %v273 = vadd.f32 %v257, %v179
      %v274 = vadd.f32 %v258, %v184
      %v275 = vadd.f32 %v259, %v187
      %v276 = vadd.f32 %v260, %v192
      %v277 = vadd.f32 %v261, %v195
      %v278 = vadd.f32 %v262, %v200
      %v279 = vadd.f32 %v263, %v203
      %v280 = vadd.f32 %v264, %v208
      %v281 = vadd.f32 %v265, %v211
      %v282 = vadd.f32 %v266, %v216
      %v283 = vadd.f32 %v267, %v219
      %v284 = vadd.f32 %v268, %v224
      %v285 = vadd.f32 %v269, %v227
      %286 = vst [vmem:[#allocation2] sm:$0xff] %v270
      %287 = vst [vmem:[#allocation2 + $0x8] sm:$0xff] %v271
      %288 = vst [vmem:[#allocation2 + $0x10] sm:$0xff] %v272
      %289 = vst [vmem:[#allocation2 + $0x18] sm:$0xff] %v273
      %290 = vst [vmem:[#allocation2 + $0x20] sm:$0xff] %v274
      %291 = vst [vmem:[#allocation2 + $0x28] sm:$0xff] %v275
      %292 = vst [vmem:[#allocation2 + $0x30] sm:$0xff] %v276
      %293 = vst [vmem:[#allocation2 + $0x38] sm:$0xff] %v277
      %294 = vst [vmem:[#allocation2 + $0x40] sm:$0xff] %v278
      %295 = vst [vmem:[#allocation2 + $0x48] sm:$0xff] %v279
      %296 = vst [vmem:[#allocation2 + $0x50] sm:$0xff] %v280
      %297 = vst [vmem:[#allocation2 + $0x58] sm:$0xff] %v281
      %298 = vst [vmem:[#allocation2 + $0x60] sm:$0xff] %v282
      %299 = vst [vmem:[#allocation2 + $0x68] sm:$0xff] %v283
      %300 = vst [vmem:[#allocation2 + $0x70] sm:$0xff] %v284
      %301 = vst [vmem:[#allocation2 + $0x78] sm:$0xff] %v285
    $region41: #{_fwd.1} parent=1 // pred_fallthru
      _
    // Predicated region
    $region42: #{_fwd.1} parent=1 // pred_check
      %p302 = pneg %p230
    $region43: #{_fwd.1} parent=1 // pred_check_branch
      %304 = sbr.rel (%p302) target = $region45
    $region44: #{_fwd.1} parent=1 // pred_region
      %v305 = vld [vmem:[#allocation2] sm:$0xff]
      %v306 = vld [vmem:[#allocation2 + $0x8] sm:$0xff]
      %v307 = vld [vmem:[#allocation2 + $0x10] sm:$0xff]
      %v308 = vld [vmem:[#allocation2 + $0x18] sm:$0xff]
      %v309 = vld [vmem:[#allocation2 + $0x20] sm:$0xff]
      %v310 = vld [vmem:[#allocation2 + $0x28] sm:$0xff]
      %v311 = vld [vmem:[#allocation2 + $0x30] sm:$0xff]
      %v312 = vld [vmem:[#allocation2 + $0x38] sm:$0xff]
      %v313 = vld [vmem:[#allocation2 + $0x40] sm:$0xff]
      %v314 = vld [vmem:[#allocation2 + $0x48] sm:$0xff]
      %v315 = vld [vmem:[#allocation2 + $0x50] sm:$0xff]
      %v316 = vld [vmem:[#allocation2 + $0x58] sm:$0xff]
      %v317 = vld [vmem:[#allocation2 + $0x60] sm:$0xff]
      %v318 = vld [vmem:[#allocation2 + $0x68] sm:$0xff]
      %v319 = vld [vmem:[#allocation2 + $0x70] sm:$0xff]
      %v320 = vld [vmem:[#allocation2 + $0x78] sm:$0xff]
      %v321 = vpack.c.bf16 %v306, %v305
      %v322 = vpack.c.bf16 %v308, %v307
      %v323 = vpack.c.bf16 %v310, %v309
      %v324 = vpack.c.bf16 %v312, %v311
      %v325 = vpack.c.bf16 %v314, %v313
      %v326 = vpack.c.bf16 %v316, %v315
      %v327 = vpack.c.bf16 %v318, %v317
      %v328 = vpack.c.bf16 %v320, %v319
      %v329 = vld [vmem:[%s2] sm:$0xf]
      %v330 = vld [vmem:[%s2 + $0x4] sm:$0xf]
      %v331 = vld [vmem:[%s2 + $0x8] sm:$0xf]
      %v332 = vld [vmem:[%s2 + $0xc] sm:$0xf]
      %v333 = vld [vmem:[%s2 + $0x10] sm:$0xf]
      %v334 = vld [vmem:[%s2 + $0x14] sm:$0xf]
      %v335 = vld [vmem:[%s2 + $0x18] sm:$0xf]
      %v336 = vld [vmem:[%s2 + $0x1c] sm:$0xf]
      %v337 = vld [vmem:[%s2 + $0x20] sm:$0xf]
      %v338 = vld [vmem:[%s2 + $0x24] sm:$0xf]
      %v339 = vld [vmem:[%s2 + $0x28] sm:$0xf]
      %v340 = vld [vmem:[%s2 + $0x2c] sm:$0xf]
      %v341 = vld [vmem:[%s2 + $0x30] sm:$0xf]
      %v342 = vld [vmem:[%s2 + $0x34] sm:$0xf]
      %v343 = vld [vmem:[%s2 + $0x38] sm:$0xf]
      %v344 = vld [vmem:[%s2 + $0x3c] sm:$0xf]
      %v345 = vld [vmem:[%s3] sm:$0x1]
      %v347 = vlaneseq
      %v348 = vshrl.u32 %v347, 7
      %v349 = vsub.s32 0, %v348
      %v350 = vrot.slane %v345, %v349
      %v368 = vunpack.c.l.b16 %v329
      %v369 = vunpack.c.l.b16 %v330
      %v370 = vunpack.c.l.b16 %v331
      %v371 = vunpack.c.l.b16 %v332
      %v372 = vunpack.c.l.b16 %v333
      %v373 = vunpack.c.l.b16 %v334
      %v374 = vunpack.c.l.b16 %v335
      %v375 = vunpack.c.l.b16 %v336
      %v376 = vunpack.c.l.b16 %v337
      %v377 = vunpack.c.l.b16 %v338
      %v378 = vunpack.c.l.b16 %v339
      %v379 = vunpack.c.l.b16 %v340
      %v380 = vunpack.c.l.b16 %v341
      %v381 = vunpack.c.l.b16 %v342
      %v382 = vunpack.c.l.b16 %v343
      %v383 = vunpack.c.l.b16 %v344
      %v384 = vpack.c.b16 %v369, %v368
      %v385 = vpack.c.b16 %v371, %v370
      %v386 = vpack.c.b16 %v373, %v372
      %v387 = vpack.c.b16 %v375, %v374
      %v388 = vpack.c.b16 %v377, %v376
      %v389 = vpack.c.b16 %v379, %v378
      %v390 = vpack.c.b16 %v381, %v380
      %v391 = vpack.c.b16 %v383, %v382
      %400 = vmatprep.subr.bf16.mxu0 0
      %401 = vmatpush1.bf16.msra.mxu0 %v391
      %402 = vmatprep.subr.bf16.mxu0 0
      %403 = vmatpush1.bf16.msra.mxu0 %v390
      %404 = vmatprep.subr.bf16.mxu0 0
      %405 = vmatpush1.bf16.msra.mxu0 %v389
      %406 = vmatprep.subr.bf16.mxu0 0
      %407 = vmatpush1.bf16.msra.mxu0 %v388
      %408 = vmatprep.subr.bf16.mxu0 0
      %409 = vmatpush1.bf16.msra.mxu0 %v387
      %410 = vmatprep.subr.bf16.mxu0 0
      %411 = vmatpush1.bf16.msra.mxu0 %v386
      %412 = vmatprep.subr.bf16.mxu0 0
      %413 = vmatpush1.bf16.msra.mxu0 %v385
      %414 = vmatprep.subr.bf16.mxu0 0
      %415 = vmatpush1.bf16.msra.mxu0 %v384
      %416 = vmatprep.subr.bf16.mxu0 0
      %417 = vmatpush2.bf16.msra.mxu0 0
      %418 = vmatprep.subr.bf16.mxu0 0
      %419 = vmatpush2.bf16.msra.mxu0 0
      %420 = vmatprep.subr.bf16.mxu0 0
      %421 = vmatpush2.bf16.msra.mxu0 0
      %422 = vmatprep.subr.bf16.mxu0 0
      %423 = vmatpush2.bf16.msra.mxu0 0
      %424 = vmatprep.subr.bf16.mxu0 0
      %425 = vmatpush2.bf16.msra.mxu0 0
      %426 = vmatprep.subr.bf16.mxu0 0
      %427 = vmatpush2.bf16.msra.mxu0 0
      %428 = vmatprep.subr.bf16.mxu0 0
      %429 = vmatpush2.bf16.msra.mxu0 0
      %430 = vmatprep.subr.bf16.mxu0 0
      %431 = vmatpush2.bf16.msra.mxu0 0
      %432 = vmatprep.mubr.bf16.mxu0 0
      %433 = vmatmul.mubr.bf16.gmra.mxu0 %v321
      %v434 = vpop.f32.mrf.mxu0
      %v435 = vadd.f32 %v350, %v434
      %v436 = vpop.f32.mrf.mxu0
      %v437 = vpop.f32.mrf.mxu0
      %v438 = vadd.f32 %v350, %v437
      %v439 = vpop.f32.mrf.mxu0
      %440 = vmatprep.mubr.bf16.mxu0 0
      %441 = vmatmul.mubr.bf16.gmra.mxu0 %v322
      %v442 = vpop.f32.mrf.mxu0
      %v443 = vadd.f32 %v350, %v442
      %v444 = vpop.f32.mrf.mxu0
      %v445 = vpop.f32.mrf.mxu0
      %v446 = vadd.f32 %v350, %v445
      %v447 = vpop.f32.mrf.mxu0
      %448 = vmatprep.mubr.bf16.mxu0 0
      %449 = vmatmul.mubr.bf16.gmra.mxu0 %v323
      %v450 = vpop.f32.mrf.mxu0
      %v451 = vadd.f32 %v350, %v450
      %v452 = vpop.f32.mrf.mxu0
      %v453 = vpop.f32.mrf.mxu0
      %v454 = vadd.f32 %v350, %v453
      %v455 = vpop.f32.mrf.mxu0
      %456 = vmatprep.mubr.bf16.mxu0 0
      %457 = vmatmul.mubr.bf16.gmra.mxu0 %v324
      %v458 = vpop.f32.mrf.mxu0
      %v459 = vadd.f32 %v350, %v458
      %v460 = vpop.f32.mrf.mxu0
      %v461 = vpop.f32.mrf.mxu0
      %v462 = vadd.f32 %v350, %v461
      %v463 = vpop.f32.mrf.mxu0
      %464 = vmatprep.mubr.bf16.mxu0 0
      %465 = vmatmul.mubr.bf16.gmra.mxu0 %v325
      %v466 = vpop.f32.mrf.mxu0
      %v467 = vadd.f32 %v350, %v466
      %v468 = vpop.f32.mrf.mxu0
      %v469 = vpop.f32.mrf.mxu0
      %v470 = vadd.f32 %v350, %v469
      %v471 = vpop.f32.mrf.mxu0
      %472 = vmatprep.mubr.bf16.mxu0 0
      %473 = vmatmul.mubr.bf16.gmra.mxu0 %v326
      %v474 = vpop.f32.mrf.mxu0
      %v475 = vadd.f32 %v350, %v474
      %v476 = vpop.f32.mrf.mxu0
      %v477 = vpop.f32.mrf.mxu0
      %v478 = vadd.f32 %v350, %v477
      %v479 = vpop.f32.mrf.mxu0
      %480 = vmatprep.mubr.bf16.mxu0 0
      %481 = vmatmul.mubr.bf16.gmra.mxu0 %v327
      %v482 = vpop.f32.mrf.mxu0
      %v483 = vadd.f32 %v350, %v482
      %v484 = vpop.f32.mrf.mxu0
      %v485 = vpop.f32.mrf.mxu0
      %v486 = vadd.f32 %v350, %v485
      %v487 = vpop.f32.mrf.mxu0
      %488 = vmatprep.mubr.bf16.mxu0 0
      %489 = vmatmul.mubr.bf16.gmra.mxu0 %v328
      %v490 = vpop.f32.mrf.mxu0
      %v491 = vadd.f32 %v350, %v490
      %v492 = vpop.f32.mrf.mxu0
      %v493 = vpop.f32.mrf.mxu0
      %v494 = vadd.f32 %v350, %v493
      %v495 = vpop.f32.mrf.mxu0
      %496 = vdwg.mxu0
      %v497 = vmax.f32 %v435, 0.0
      %v498 = vmax.f32 %v438, 0.0
      %v499 = vmax.f32 %v443, 0.0
      %v500 = vmax.f32 %v446, 0.0
      %v501 = vmax.f32 %v451, 0.0
      %v502 = vmax.f32 %v454, 0.0
      %v503 = vmax.f32 %v459, 0.0
      %v504 = vmax.f32 %v462, 0.0
      %v505 = vmax.f32 %v467, 0.0
      %v506 = vmax.f32 %v470, 0.0
      %v507 = vmax.f32 %v475, 0.0
      %v508 = vmax.f32 %v478, 0.0
      %v509 = vmax.f32 %v483, 0.0
      %v510 = vmax.f32 %v486, 0.0
      %v511 = vmax.f32 %v491, 0.0
      %v512 = vmax.f32 %v494, 0.0
      %v513 = vpack.c.bf16 %v498, %v497
      %v514 = vpack.c.bf16 %v500, %v499
      %v515 = vpack.c.bf16 %v502, %v501
      %v516 = vpack.c.bf16 %v504, %v503
      %v517 = vpack.c.bf16 %v506, %v505
      %v518 = vpack.c.bf16 %v508, %v507
      %v519 = vpack.c.bf16 %v510, %v509
      %v520 = vpack.c.bf16 %v512, %v511
      %v521 = vld [vmem:[#allocation5] sm:$0xf]
      %v522 = vld [vmem:[#allocation5 + $0x4] sm:$0xf]
      %v523 = vld [vmem:[#allocation5 + $0x8] sm:$0xf]
      %v524 = vld [vmem:[#allocation5 + $0xc] sm:$0xf]
      %v525 = vld [vmem:[#allocation5 + $0x10] sm:$0xf]
      %v526 = vld [vmem:[#allocation5 + $0x14] sm:$0xf]
      %v527 = vld [vmem:[#allocation5 + $0x18] sm:$0xf]
      %v528 = vld [vmem:[#allocation5 + $0x1c] sm:$0xf]
      %v529 = vld [vmem:[#allocation5 + $0x20] sm:$0xf]
      %v530 = vld [vmem:[#allocation5 + $0x24] sm:$0xf]
      %v531 = vld [vmem:[#allocation5 + $0x28] sm:$0xf]
      %v532 = vld [vmem:[#allocation5 + $0x2c] sm:$0xf]
      %v533 = vld [vmem:[#allocation5 + $0x30] sm:$0xf]
      %v534 = vld [vmem:[#allocation5 + $0x34] sm:$0xf]
      %v535 = vld [vmem:[#allocation5 + $0x38] sm:$0xf]
      %v536 = vld [vmem:[#allocation5 + $0x3c] sm:$0xf]
      %v537 = vld [vmem:[%s5] sm:$0x1]
      %v539 = vlaneseq
      %v540 = vshrl.u32 %v539, 7
      %v541 = vsub.s32 0, %v540
      %v542 = vrot.slane %v537, %v541
      %v560 = vunpack.c.l.b16 %v521
      %v561 = vunpack.c.l.b16 %v522
      %v562 = vunpack.c.l.b16 %v523
      %v563 = vunpack.c.l.b16 %v524
      %v564 = vunpack.c.l.b16 %v525
      %v565 = vunpack.c.l.b16 %v526
      %v566 = vunpack.c.l.b16 %v527
      %v567 = vunpack.c.l.b16 %v528
      %v568 = vunpack.c.l.b16 %v529
      %v569 = vunpack.c.l.b16 %v530
      %v570 = vunpack.c.l.b16 %v531
      %v571 = vunpack.c.l.b16 %v532
      %v572 = vunpack.c.l.b16 %v533
      %v573 = vunpack.c.l.b16 %v534
      %v574 = vunpack.c.l.b16 %v535
      %v575 = vunpack.c.l.b16 %v536
      %v576 = vpack.c.b16 %v561, %v560
      %v577 = vpack.c.b16 %v563, %v562
      %v578 = vpack.c.b16 %v565, %v564
      %v579 = vpack.c.b16 %v567, %v566
      %v580 = vpack.c.b16 %v569, %v568
      %v581 = vpack.c.b16 %v571, %v570
      %v582 = vpack.c.b16 %v573, %v572
      %v583 = vpack.c.b16 %v575, %v574
      %592 = vmatprep.subr.bf16.mxu0 0
      %593 = vmatpush1.bf16.msra.mxu0 %v583
      %594 = vmatprep.subr.bf16.mxu0 0
      %595 = vmatpush1.bf16.msra.mxu0 %v582
      %596 = vmatprep.subr.bf16.mxu0 0
      %597 = vmatpush1.bf16.msra.mxu0 %v581
      %598 = vmatprep.subr.bf16.mxu0 0
      %599 = vmatpush1.bf16.msra.mxu0 %v580
      %600 = vmatprep.subr.bf16.mxu0 0
      %601 = vmatpush1.bf16.msra.mxu0 %v579
      %602 = vmatprep.subr.bf16.mxu0 0
      %603 = vmatpush1.bf16.msra.mxu0 %v578
      %604 = vmatprep.subr.bf16.mxu0 0
      %605 = vmatpush1.bf16.msra.mxu0 %v577
      %606 = vmatprep.subr.bf16.mxu0 0
      %607 = vmatpush1.bf16.msra.mxu0 %v576
      %608 = vmatprep.subr.bf16.mxu0 0
      %609 = vmatpush2.bf16.msra.mxu0 0
      %610 = vmatprep.subr.bf16.mxu0 0
      %611 = vmatpush2.bf16.msra.mxu0 0
      %612 = vmatprep.subr.bf16.mxu0 0
      %613 = vmatpush2.bf16.msra.mxu0 0
      %614 = vmatprep.subr.bf16.mxu0 0
      %615 = vmatpush2.bf16.msra.mxu0 0
      %616 = vmatprep.subr.bf16.mxu0 0
      %617 = vmatpush2.bf16.msra.mxu0 0
      %618 = vmatprep.subr.bf16.mxu0 0
      %619 = vmatpush2.bf16.msra.mxu0 0
      %620 = vmatprep.subr.bf16.mxu0 0
      %621 = vmatpush2.bf16.msra.mxu0 0
      %622 = vmatprep.subr.bf16.mxu0 0
      %623 = vmatpush2.bf16.msra.mxu0 0
      %624 = vmatprep.mubr.bf16.mxu0 0
      %625 = vmatmul.mubr.bf16.gmra.mxu0 %v513
      %v626 = vpop.f32.mrf.mxu0
      %v627 = vadd.f32 %v542, %v626
      %v628 = vpop.f32.mrf.mxu0
      %v629 = vpop.f32.mrf.mxu0
      %v630 = vadd.f32 %v542, %v629
      %v631 = vpop.f32.mrf.mxu0
      %632 = vmatprep.mubr.bf16.mxu0 0
      %633 = vmatmul.mubr.bf16.gmra.mxu0 %v514
      %v634 = vpop.f32.mrf.mxu0
      %v635 = vadd.f32 %v542, %v634
      %v636 = vpop.f32.mrf.mxu0
      %v637 = vpop.f32.mrf.mxu0
      %v638 = vadd.f32 %v542, %v637
      %v639 = vpop.f32.mrf.mxu0
      %640 = vmatprep.mubr.bf16.mxu0 0
      %641 = vmatmul.mubr.bf16.gmra.mxu0 %v515
      %v642 = vpop.f32.mrf.mxu0
      %v643 = vadd.f32 %v542, %v642
      %v644 = vpop.f32.mrf.mxu0
      %v645 = vpop.f32.mrf.mxu0
      %v646 = vadd.f32 %v542, %v645
      %v647 = vpop.f32.mrf.mxu0
      %648 = vmatprep.mubr.bf16.mxu0 0
      %649 = vmatmul.mubr.bf16.gmra.mxu0 %v516
      %v650 = vpop.f32.mrf.mxu0
      %v651 = vadd.f32 %v542, %v650
      %v652 = vpop.f32.mrf.mxu0
      %v653 = vpop.f32.mrf.mxu0
      %v654 = vadd.f32 %v542, %v653
      %v655 = vpop.f32.mrf.mxu0
      %656 = vmatprep.mubr.bf16.mxu0 0
      %657 = vmatmul.mubr.bf16.gmra.mxu0 %v517
      %v658 = vpop.f32.mrf.mxu0
      %v659 = vadd.f32 %v542, %v658
      %v660 = vpop.f32.mrf.mxu0
      %v661 = vpop.f32.mrf.mxu0
      %v662 = vadd.f32 %v542, %v661
      %v663 = vpop.f32.mrf.mxu0
      %664 = vmatprep.mubr.bf16.mxu0 0
      %665 = vmatmul.mubr.bf16.gmra.mxu0 %v518
      %v666 = vpop.f32.mrf.mxu0
      %v667 = vadd.f32 %v542, %v666
      %v668 = vpop.f32.mrf.mxu0
      %v669 = vpop.f32.mrf.mxu0
      %v670 = vadd.f32 %v542, %v669
      %v671 = vpop.f32.mrf.mxu0
      %672 = vmatprep.mubr.bf16.mxu0 0
      %673 = vmatmul.mubr.bf16.gmra.mxu0 %v519
      %v674 = vpop.f32.mrf.mxu0
      %v675 = vadd.f32 %v542, %v674
      %v676 = vpop.f32.mrf.mxu0
      %v677 = vpop.f32.mrf.mxu0
      %v678 = vadd.f32 %v542, %v677
      %v679 = vpop.f32.mrf.mxu0
      %680 = vmatprep.mubr.bf16.mxu0 0
      %681 = vmatmul.mubr.bf16.gmra.mxu0 %v520
      %v682 = vpop.f32.mrf.mxu0
      %v683 = vadd.f32 %v542, %v682
      %v684 = vpop.f32.mrf.mxu0
      %v685 = vpop.f32.mrf.mxu0
      %v686 = vadd.f32 %v542, %v685
      %v687 = vpop.f32.mrf.mxu0
      %688 = vdwg.mxu0
      %689 = vst [vmem:[%s6] sm:$0xff] %v627
      %690 = vst [vmem:[%s6 + $0x8] sm:$0xff] %v630
      %691 = vst [vmem:[%s6 + $0x10] sm:$0xff] %v635
      %692 = vst [vmem:[%s6 + $0x18] sm:$0xff] %v638
      %693 = vst [vmem:[%s6 + $0x20] sm:$0xff] %v643
      %694 = vst [vmem:[%s6 + $0x28] sm:$0xff] %v646
      %695 = vst [vmem:[%s6 + $0x30] sm:$0xff] %v651
      %696 = vst [vmem:[%s6 + $0x38] sm:$0xff] %v654
      %697 = vst [vmem:[%s6 + $0x40] sm:$0xff] %v659
      %698 = vst [vmem:[%s6 + $0x48] sm:$0xff] %v662
      %699 = vst [vmem:[%s6 + $0x50] sm:$0xff] %v667
      %700 = vst [vmem:[%s6 + $0x58] sm:$0xff] %v670
      %701 = vst [vmem:[%s6 + $0x60] sm:$0xff] %v675
      %702 = vst [vmem:[%s6 + $0x68] sm:$0xff] %v678
      %703 = vst [vmem:[%s6 + $0x70] sm:$0xff] %v683
      %704 = vst [vmem:[%s6 + $0x78] sm:$0xff] %v686
    $region45: #{_fwd.1} parent=1 // pred_fallthru
      _
    // Predicated region
    $region46: #{_fwd.1} parent=1 // pred_check
      _
    $region47: #{_fwd.1} parent=1 // pred_check_branch
      %706 = sbr.rel (0) target = $region49
    $region48: #{_fwd.1} parent=1 // pred_region
      _
    $region49: #{_fwd.1} parent=1 // pred_fallthru
      _
    // Predicated region
    $region50: #{_fwd.1} parent=1 // pred_check
      _
    $region51: #{_fwd.1} parent=1 // pred_check_branch
      %708 = sbr.rel (0) target = $region53
    $region52: #{_fwd.1} parent=1 // pred_region
      _
    $region53: #{_fwd.1} parent=1 // pred_fallthru
      _
    %709 = vsyncpa [#allocation4], 1
    %710 = vsyncpa [#allocation6], 1

</llo_original>
